<compile_context>
chip_gen: v7x
topology: tpu7x:2x2x1
jax: 0.10.0
libtpu: 0.0.40
codegen_flags: <defaults>
</compile_context>

<pallas_src>
import jax
import jax.numpy as jnp
from jax.experimental import pallas as pl
from jax.experimental.pallas import tpu as pltpu

# small, module-consistent sizes
E = 32                    # embedding_size
CAT_VOCABS = (5, 7)       # cat_feat = [5, 7]  (two categorical features)
N_CAT = len(CAT_VOCABS)
N_NUM = 4                 # n_num_feat
F_FINAL = N_CAT * E + E   # final_n_features
V0, V1 = CAT_VOCABS

BIAS_COL = V0 + V1                          # design-matrix column holding constant 1
K_CAT_P = ((V0 + V1 + 1 + 7) // 8) * 8      # categorical+bias block, padded to sublane mult (16)
K_TOT = K_CAT_P + N_NUM                     # rows of packed table (20)

BLOCK_B = 128                               # rows per grid step (multiple of 8)


def embedder_kernel(xcat_ref, xnum_ref, wpacked_ref, out_ref):
    bt = xcat_ref.shape[0]
    # Design matrix for the categorical branch + folded bias:
    #   col j < V0        : onehot of idx0
    #   col V0 <= j < V0+V1: onehot of idx1 (offset by V0)
    #   col BIAS_COL       : constant 1 (multiplies the folded bias row)
    #   padding cols       : always 0 (matching zero rows in the packed table)
    idx0 = xcat_ref[:, 0:1]                                       # [Bt, 1] int32
    idx1 = xcat_ref[:, 1:2] + V0                                  # [Bt, 1] int32
    iota = jax.lax.broadcasted_iota(jnp.int32, (bt, K_CAT_P), 1)  # [Bt, 16]
    design_cat = ((iota == idx0) | (iota == idx1) |
                  (iota == BIAS_COL)).astype(jnp.float32)         # [Bt, 16]

    acc = jnp.dot(design_cat, wpacked_ref[:K_CAT_P, :],
                  preferred_element_type=jnp.float32)             # [Bt, E]
    acc += jnp.dot(xnum_ref[...], wpacked_ref[K_CAT_P:, :],
                   preferred_element_type=jnp.float32)            # normalisation is folded in
    out_ref[...] = acc


def pack_embedder_params(p):
    """Host-side algebraic folding of all weights into one [K_TOT, E] table."""
    w3 = p["w_fin"][N_CAT * E:, :]                                # final weights for num branch
    t0 = p["tab0"] @ p["w_fin"][0:E, :]                           # [V0, E]
    t1 = p["tab1"] @ p["w_fin"][E:2 * E, :]                       # [V1, E]
    wn = (p["w_num"] / p["stds"].T) @ w3                          # diag(1/stds) @ w_num @ W3
    b_fold = (p["b_num"] - (p["means"] / p["stds"]) @ p["w_num"]) @ w3 + p["b_fin"]   # [1, E]
    pad = jnp.zeros((K_CAT_P - (V0 + V1 + 1), E), jnp.float32)
    return jnp.concatenate([t0, t1, b_fold, pad, wn], axis=0).astype(jnp.float32)


def embedder_forward(x_cat, x_num, w_packed, *, block_b=BLOCK_B):
    b = x_cat.shape[0]
    b_pad = ((b + block_b - 1) // block_b) * block_b
    if b_pad != b:
        x_cat = jnp.pad(x_cat, ((0, b_pad - b), (0, 0)))
        x_num = jnp.pad(x_num, ((0, b_pad - b), (0, 0)))
    out = pl.pallas_call(
        embedder_kernel,
        out_shape=jax.ShapeDtypeStruct((b_pad, E), jnp.float32),
        grid_spec=pltpu.PrefetchScalarGridSpec(
            num_scalar_prefetch=0,
            grid=(b_pad // block_b,),
            in_specs=[pl.BlockSpec((block_b, N_CAT), lambda i: (i, 0)),
                      pl.BlockSpec((block_b, N_NUM), lambda i: (i, 0)),
                      pl.BlockSpec((K_TOT, E), lambda i: (0, 0))],   # resident packed table
            out_specs=pl.BlockSpec((block_b, E), lambda i: (i, 0)),
        ),
        compiler_params=pltpu.CompilerParams(
            dimension_semantics=("parallel",)),                      # v7x: split batch across TCs
    )(x_cat, x_num, w_packed)
    return out[:b, None, :]   # [B, 1, E], matching the PyTorch module


def ref_forward(x_cat, x_num, p):
    # pure-JAX reference mirroring the PyTorch forward (unfused path)
    tabs = [p["tab0"], p["tab1"]]
    embs = [tabs[f][x_cat[:, f]] for f in range(N_CAT)]
    xn = (x_num - p["means"]) / p["stds"]
    embs.append(xn @ p["w_num"] + p["b_num"])
    feat = jnp.concatenate(embs, axis=-1)          # [B, F_FINAL]
    return (feat @ p["w_fin"] + p["b_fin"])[:, None, :]


if __name__ == "__main__":
    key = jax.random.PRNGKey(0)
    ks = jax.random.split(key, 10)

    params = {
        "tab0": jax.random.normal(ks[0], (V0, E), jnp.float32),
        "tab1": jax.random.normal(ks[1], (V1, E), jnp.float32),
        "means": jax.random.normal(ks[2], (1, N_NUM), jnp.float32),
        "stds": jax.random.uniform(ks[3], (1, N_NUM), jnp.float32,
                                   minval=0.5, maxval=1.5),
        "w_num": jax.random.normal(ks[4], (N_NUM, E), jnp.float32) * 0.1,
        "b_num": jax.random.normal(ks[5], (1, E), jnp.float32) * 0.1,
        "w_fin": jax.random.normal(ks[6], (F_FINAL, E), jnp.float32) * 0.1,
        "b_fin": jax.random.normal(ks[7], (1, E), jnp.float32) * 0.1,
    }

    B = 200   # batched; padded to 256 inside the wrapper (grid of 2 x BLOCK_B rows)
    x_cat = jnp.stack(
        [jax.random.randint(ks[8], (B,), 0, V0, jnp.int32),
         jax.random.randint(ks[9], (B,), 0, V1, jnp.int32)],
        axis=1)                                                  # [B, n_cat]
    x_num = jax.random.normal(jax.random.PRNGKey(123), (B, N_NUM), jnp.float32)

    w_packed = pack_embedder_params(params)                      # [K_TOT, E], done once host-side

    out = embedder_forward(x_cat, x_num, w_packed)
    out = jax.block_until_ready(out)

    ref = ref_forward(x_cat, x_num, params)
    assert out.shape == (B, 1, E)
    assert jnp.allclose(out, ref, atol=1e-4, rtol=1e-4)

    # TODO(synk): queue bookkeeping / mode-based placeholder sampling
    # (update_queues, get_random_cat/num) is host-side Python state, not kernel work.
    print("KERNEL_OK")
</pallas_src>

<mosaic_0001>
module attributes {stable_mosaic.version = 11 : i64} {
  func.func @embedder_kernel(%arg0: i32, %arg1: memref<128x2xi32, #tpu.memory_space<vmem>>, %arg2: memref<128x4xf32, #tpu.memory_space<vmem>>, %arg3: memref<20x32xf32, #tpu.memory_space<vmem>>, %arg4: memref<128x32xf32, #tpu.memory_space<vmem>>) attributes {dimension_semantics = [#tpu.dimension_semantics<parallel>], iteration_bounds = array<i64: 2>, scalar_prefetch = 0 : i64, scratch_operands = 0 : i64, tpu.core_type = #tpu.core_type<tc>, window_params = [{transform_indices = @transform_0, window_bounds = array<i64: 128, 2>}, {transform_indices = @transform_1, window_bounds = array<i64: 128, 4>}, {pipeline_mode = #tpu.pipeline_mode<synchronous>, transform_indices = @transform_2, window_bounds = array<i64: 20, 32>}, {transform_indices = @transform_3, window_bounds = array<i64: 128, 32>}]} {
    %c0 = arith.constant 0 : index
    %c0_0 = arith.constant 0 : index
    %0 = vector.load %arg1[%c0, %c0_0] : memref<128x2xi32, #tpu.memory_space<vmem>>, vector<128x1xi32>
    %c0_1 = arith.constant 0 : index
    %c1 = arith.constant 1 : index
    %1 = vector.load %arg1[%c0_1, %c1] : memref<128x2xi32, #tpu.memory_space<vmem>>, vector<128x1xi32>
    %c5_i32 = arith.constant 5 : i32
    %2 = vector.broadcast %c5_i32 : i32 to vector<128x1xi32>
    %3 = arith.addi %1, %2 : vector<128x1xi32>
    %4 = tpu.iota {dimensions = array<i32: 1>} : vector<128x16xi32>
    %5 = vector.broadcast %0 : vector<128x1xi32> to vector<128x16xi32>
    %6 = arith.cmpi eq, %4, %5 : vector<128x16xi32>
    %7 = vector.broadcast %3 : vector<128x1xi32> to vector<128x16xi32>
    %8 = arith.cmpi eq, %4, %7 : vector<128x16xi32>
    %9 = arith.ori %6, %8 : vector<128x16xi1>
    %c12_i32 = arith.constant 12 : i32
    %10 = vector.broadcast %c12_i32 : i32 to vector<128x16xi32>
    %11 = arith.cmpi eq, %4, %10 : vector<128x16xi32>
    %12 = arith.ori %9, %11 : vector<128x16xi1>
    %13 = arith.extui %12 : vector<128x16xi1> to vector<128x16xi32>
    %14 = arith.sitofp %13 : vector<128x16xi32> to vector<128x16xf32>
    %c0_2 = arith.constant 0 : index
    %c0_3 = arith.constant 0 : index
    %15 = vector.load %arg3[%c0_2, %c0_3] : memref<20x32xf32, #tpu.memory_space<vmem>>, vector<16x32xf32>
    %cst = arith.constant dense<0.000000e+00> : vector<128x32xf32>
    %16 = tpu.matmul %14, %15, %cst {dimension_numbers = #tpu.dot_dimension_numbers<[1], [0], [0], [1], [0, 0, 1, 1], [], []>} : vector<128x16xf32>, vector<16x32xf32>, vector<128x32xf32> -> vector<128x32xf32>
    %c0_4 = arith.constant 0 : index
    %c0_5 = arith.constant 0 : index
    %17 = vector.load %arg2[%c0_4, %c0_5] : memref<128x4xf32, #tpu.memory_space<vmem>>, vector<128x4xf32>
    %c16 = arith.constant 16 : index
    %c0_6 = arith.constant 0 : index
    %18 = vector.load %arg3[%c16, %c0_6] : memref<20x32xf32, #tpu.memory_space<vmem>>, vector<4x32xf32>
    %cst_7 = arith.constant dense<0.000000e+00> : vector<128x32xf32>
    %19 = tpu.matmul %17, %18, %cst_7 {dimension_numbers = #tpu.dot_dimension_numbers<[1], [0], [0], [1], [0, 0, 1, 1], [], []>} : vector<128x4xf32>, vector<4x32xf32>, vector<128x32xf32> -> vector<128x32xf32>
    %20 = arith.addf %16, %19 : vector<128x32xf32>
    %c0_8 = arith.constant 0 : index
    %c0_9 = arith.constant 0 : index
    %21 = vector.load %arg4[%c0_8, %c0_9] : memref<128x32xf32, #tpu.memory_space<vmem>>, vector<128x32xf32>
    tpu.vector_store %arg4[%c0_8, %c0_9], %20 {strides = array<i32>} : memref<128x32xf32, #tpu.memory_space<vmem>>, vector<128x32xf32>,
    return
  }
  func.func @transform_0(%arg0: i32) -> (i32, i32) {
    %c0_i32 = arith.constant 0 : i32
    %c0_i32_0 = arith.constant 0 : i32
    return %arg0, %c0_i32 : i32, i32
  }
  func.func @transform_1(%arg0: i32) -> (i32, i32) {
    %c0_i32 = arith.constant 0 : i32
    %c0_i32_0 = arith.constant 0 : i32
    return %arg0, %c0_i32 : i32, i32
  }
  func.func @transform_2(%arg0: i32) -> (i32, i32) {
    %c0_i32 = arith.constant 0 : i32
    %c0_i32_0 = arith.constant 0 : i32
    %c0_i32_1 = arith.constant 0 : i32
    return %c0_i32, %c0_i32_0 : i32, i32
  }
  func.func @transform_3(%arg0: i32) -> (i32, i32) {
    %c0_i32 = arith.constant 0 : i32
    %c0_i32_0 = arith.constant 0 : i32
    return %arg0, %c0_i32 : i32, i32
  }
}

</mosaic_0001>

<llo_original>
// kernel: tpu_custom_call.1
$region0: #{tpu_custom_call.1}
  #allocation0 [shape = 'u32[]', space=smem, size = 0x4, offset = 0x4, fixed_abs, tag = 'smem constant byte address 0x4 - core index']
  #allocation1 [shape = 'u32[144,128]{1,0:T(1,128)}', space=vmem, size = 0x12000, scoped, tag = 'internal scratch']
  %s0 = inlined_call_operand.vmem [shape: s32[256,2], index: 0, kind: input, shape index: {}]
  %s1 = inlined_call_operand.vmem [shape: f32[256,4], index: 1, kind: input, shape index: {}]
  %s2 = inlined_call_operand.vmem [shape: f32[20,32], index: 2, kind: input, shape index: {}]
  %s3 = inlined_call_operand.vmem [shape: f32[256,32], index: 3, kind: output, shape index: {}]
  %s4 = sld [smem:[#allocation0]]
  $region45: #{tpu_custom_call.1} parent=0
    _
  %s6 = ssub.s32 1, %s4
  %s7 = scalar_select 0, %s6, %s4
  loop: start=0, step=1, limit=4
  $region2: #{tpu_custom_call.1} parent=0 // loop_pre_header
    _
  $region3: #{tpu_custom_call.1} parent=0 // loop_header
    %s9 = sphi 0, %s13
    %p10 = scmp.ge.s32.totalorder %s9, 4
    %s19 = sphi 0, %s21
    %s22 = sphi 0, %s19
    %s23 = sphi 0, %s22
    %s39 = sphi 0, %s23
    %s45 = sphi 0, %s47
    %s48 = sphi 0, %s45
    %s49 = sphi 0, %s48
    %s65 = sphi 0, %s49
    %s69 = sphi 0, %s69
    %s71 = sphi 0, %s69
    %s72 = sphi 0, %s71
    %s86 = sphi 0, %s72
    %s92 = sphi 0, %s94
    %s95 = sphi 0, %s92
    %s96 = sphi 0, %s95
    %s112 = sphi 0, %s96
  $region4: #{tpu_custom_call.1} parent=0 // loop_header_branch
    %12 = sbr.rel (%p10) target = $region8
  $region5: #{tpu_custom_call.1} parent=0 // loop_body
    %s14 = ssub.s32 %s9, 1
    %s15 = ssub.s32 %s9, 2
    %s16 = sadd.s32 %s9, 1
    %s17 = ssub.s32 %s9, %s16
    %p18 = scmp.eq.s32.totalorder %s17, 0
    %s20 = sadd.s32 %s19, 1
    %s21 = scalar_select %p18, %s19, %s20
    %p24 = pneg %p18
    %p25 = scmp.eq.s32.totalorder %s9, 1
    %p26 = por %p24, %p25
    %p27 = scmp.ne.s32.totalorder %s19, %s22
    %p28 = scmp.eq.s32.totalorder %s9, 0
    %p29 = por %p27, %p28
    %p30 = scmp.ne.s32.totalorder %s19, %s22
    %p31 = scmp.eq.s32.totalorder %s14, 1
    %p32 = por %p30, %p31
    %p33 = scmp.ne.s32.totalorder %s22, %s23
    %p34 = scmp.eq.s32.totalorder %s14, 0
    %p35 = por %p33, %p34
    %p36 = scmp.ne.s32.totalorder %s22, %s23
    %p37 = scmp.eq.s32.totalorder %s15, 1
    %p38 = por %p36, %p37
    %p40 = scmp.ne.s32.totalorder %s23, %s39
    %p41 = scmp.eq.s32.totalorder %s15, 0
    %p42 = por %p40, %p41
    %s43 = ssub.s32 %s9, %s16
    %p44 = scmp.eq.s32.totalorder %s43, 0
    %s46 = sadd.s32 %s45, 1
    %s47 = scalar_select %p44, %s45, %s46
    %p50 = pneg %p44
    %p51 = scmp.eq.s32.totalorder %s9, 1
    %p52 = por %p50, %p51
    %p53 = scmp.ne.s32.totalorder %s45, %s48
    %p54 = scmp.eq.s32.totalorder %s9, 0
    %p55 = por %p53, %p54
    %p56 = scmp.ne.s32.totalorder %s45, %s48
    %p57 = scmp.eq.s32.totalorder %s14, 1
    %p58 = por %p56, %p57
    %p59 = scmp.ne.s32.totalorder %s48, %s49
    %p60 = scmp.eq.s32.totalorder %s14, 0
    %p61 = por %p59, %p60
    %p62 = scmp.ne.s32.totalorder %s48, %s49
    %p63 = scmp.eq.s32.totalorder %s15, 1
    %p64 = por %p62, %p63
    %p66 = scmp.ne.s32.totalorder %s49, %s65
    %p67 = scmp.eq.s32.totalorder %s15, 0
    %p68 = por %p66, %p67
    %s70 = sadd.s32 %s69, 1
    %p73 = scmp.eq.s32.totalorder %s9, 1
    %p74 = scmp.ne.s32.totalorder %s69, %s71
    %p75 = scmp.eq.s32.totalorder %s9, 0
    %p76 = por %p74, %p75
    %p77 = scmp.ne.s32.totalorder %s69, %s71
    %p78 = scmp.eq.s32.totalorder %s14, 1
    %p79 = por %p77, %p78
    %p80 = scmp.ne.s32.totalorder %s71, %s72
    %p81 = scmp.eq.s32.totalorder %s14, 0
    %p82 = por %p80, %p81
    %p83 = scmp.ne.s32.totalorder %s71, %s72
    %p84 = scmp.eq.s32.totalorder %s15, 1
    %p85 = por %p83, %p84
    %p87 = scmp.ne.s32.totalorder %s72, %s86
    %p88 = scmp.eq.s32.totalorder %s15, 0
    %p89 = por %p87, %p88
    %s90 = ssub.s32 %s9, %s16
    %p91 = scmp.eq.s32.totalorder %s90, 0
    %s93 = sadd.s32 %s92, 1
    %s94 = scalar_select %p91, %s92, %s93
    %p97 = pneg %p91
    %p98 = scmp.eq.s32.totalorder %s9, 1
    %p99 = por %p97, %p98
    %p100 = scmp.ne.s32.totalorder %s92, %s95
    %p101 = scmp.eq.s32.totalorder %s9, 0
    %p102 = por %p100, %p101
    %p103 = scmp.ne.s32.totalorder %s92, %s95
    %p104 = scmp.eq.s32.totalorder %s14, 1
    %p105 = por %p103, %p104
    %p106 = scmp.ne.s32.totalorder %s95, %s96
    %p107 = scmp.eq.s32.totalorder %s14, 0
    %p108 = por %p106, %p107
    %p109 = scmp.ne.s32.totalorder %s95, %s96
    %p110 = scmp.eq.s32.totalorder %s15, 1
    %p111 = por %p109, %p110
    %p113 = scmp.ne.s32.totalorder %s96, %s112
    %p114 = scmp.eq.s32.totalorder %s15, 0
    %p115 = por %p113, %p114
    %p116 = scmp.le.s32.totalorder 1, %s9
    %p117 = scmp.lt.s32.totalorder %s9, 3
    %p118 = pnand %p116, %p117
    %p119 = pneg %p118
    // Predicated region
    $region9: #{tpu_custom_call.1} parent=5 // pred_check
      _
    $region10: #{tpu_custom_call.1} parent=5 // pred_check_branch
      %121 = sbr.rel (%p118) target = $region12
    $region11: #{tpu_custom_call.1} parent=5 // pred_region
      %s122 = ssub.s32 %s9, 1
      // Predicated region
      $region13: #{tpu_custom_call.1} parent=11 // pred_check
        %p123 = pneg %p82
      $region14: #{tpu_custom_call.1} parent=11 // pred_check_branch
        %125 = sbr.rel (%p123) target = $region16
      $region15: #{tpu_custom_call.1} parent=11 // pred_region
        _
      $region16: #{tpu_custom_call.1} parent=11 // pred_fallthru
        _
    $region12: #{tpu_custom_call.1} parent=5 // pred_fallthru
      _
    %p126 = scmp.lt.s32.totalorder %s9, 2
    // Predicated region
    $region17: #{tpu_custom_call.1} parent=5 // pred_check
      %p127 = pneg %p126
    $region18: #{tpu_custom_call.1} parent=5 // pred_check_branch
      %129 = sbr.rel (%p127) target = $region20
    $region19: #{tpu_custom_call.1} parent=5 // pred_region
      // Predicated region
      $region21: #{tpu_custom_call.1} parent=19 // pred_check
        %p130 = pneg %p29
      $region22: #{tpu_custom_call.1} parent=19 // pred_check_branch
        %132 = sbr.rel (%p130) target = $region24
      $region23: #{tpu_custom_call.1} parent=19 // pred_region
        %s133 = smul.u32 16, %s9
        %p134 = scmp.lt.s32.totalorder %s133, 31
        %s135 = scalar_select %p134, %s133, 31
        %s136 = smul.addr %s135, 8
        %s137 = scalar_lea.vmem %s0, %s136
        %s138 = smul.u32 16, %s9
      $region24: #{tpu_custom_call.1} parent=19 // pred_fallthru
        _
      // Predicated region
      $region25: #{tpu_custom_call.1} parent=19 // pred_check
        %p139 = pneg %p55
      $region26: #{tpu_custom_call.1} parent=19 // pred_check_branch
        %141 = sbr.rel (%p139) target = $region28
      $region27: #{tpu_custom_call.1} parent=19 // pred_region
        %s142 = smul.u32 16, %s9
        %p143 = scmp.lt.s32.totalorder %s142, 31
        %s144 = scalar_select %p143, %s142, 31
        %s145 = smul.addr %s144, 8
        %s146 = scalar_lea.vmem %s1, %s145
        %s147 = smul.u32 16, %s9
      $region28: #{tpu_custom_call.1} parent=19 // pred_fallthru
        _
    $region20: #{tpu_custom_call.1} parent=5 // pred_fallthru
      _
    %p148 = scmp.le.s32.totalorder 1, %s9
    %p149 = scmp.lt.s32.totalorder %s9, 3
    %p150 = pnand %p148, %p149
    %p151 = pneg %p150
    // Predicated region
    $region29: #{tpu_custom_call.1} parent=5 // pred_check
      _
    $region30: #{tpu_custom_call.1} parent=5 // pred_check_branch
      %153 = sbr.rel (%p150) target = $region32
    $region31: #{tpu_custom_call.1} parent=5 // pred_region
      %s154 = ssub.s32 %s9, 1
      %s155 = smul.u32 16, %s14
      %p156 = scmp.lt.s32.totalorder %s155, 31
      %s157 = scalar_select %p156, %s155, 31
      %s158 = smul.addr %s157, 8
      %s159 = scalar_lea.vmem %s0, %s158
      %p160 = pneg %p35
      %p161 = pneg %p32
      %s162 = smul.u32 16, %s14
      %p163 = scmp.lt.s32.totalorder %s162, 31
      %s164 = scalar_select %p163, %s162, 31
      %s165 = smul.addr %s164, 8
      %s166 = scalar_lea.vmem %s1, %s165
      %p167 = pneg %p61
      %p168 = pneg %p58
      %p169 = pneg %p82
      %p170 = pneg %p79
      %p171 = pneg %p108
      %p172 = pneg %p105
      %s173 = smul.u32 16, %s14
      %p174 = scmp.lt.s32.totalorder %s173, 31
      %s175 = scalar_select %p174, %s173, 31
      %s176 = smul.addr %s175, 8
      %s177 = scalar_lea.vmem %s3, %s176
      %s178 = smul.u32 16, %s14
      %p179 = scmp.lt.s32.totalorder %s178, 31
      %s180 = scalar_select %p179, %s178, 31
      %s181 = smul.addr %s180, 8
      %s182 = scalar_lea.vmem %s0, %s181
      %s183 = smul.u32 16, %s14
      %s184 = smul.u32 16, %s14
      %p185 = scmp.lt.s32.totalorder %s184, 31
      %s186 = scalar_select %p185, %s184, 31
      %s187 = smul.addr %s186, 8
      %s188 = scalar_lea.vmem %s1, %s187
      %s189 = smul.u32 16, %s14
      %s190 = smul.u32 16, %s14
      %p191 = scmp.lt.s32.totalorder %s190, 31
      %s192 = scalar_select %p191, %s190, 31
      %s193 = smul.addr %s192, 8
      %s194 = scalar_lea.vmem %s3, %s193
      %s195 = smul.u32 16, %s14
      %v196 = vld [vmem:[%s182] sm:$0xff]
      %v197 = vld [vmem:[%s182 + $0x8] sm:$0xff]
      %v198 = vld [vmem:[%s182 + $0x10] sm:$0xff]
      %v199 = vld [vmem:[%s182 + $0x18] sm:$0xff]
      %v200 = vld [vmem:[%s182 + $0x20] sm:$0xff]
      %v201 = vld [vmem:[%s182 + $0x28] sm:$0xff]
      %v202 = vld [vmem:[%s182 + $0x30] sm:$0xff]
      %v203 = vld [vmem:[%s182 + $0x38] sm:$0xff]
      %v204 = vld [vmem:[%s182 + $0x40] sm:$0xff]
      %v205 = vld [vmem:[%s182 + $0x48] sm:$0xff]
      %v206 = vld [vmem:[%s182 + $0x50] sm:$0xff]
      %v207 = vld [vmem:[%s182 + $0x58] sm:$0xff]
      %v208 = vld [vmem:[%s182 + $0x60] sm:$0xff]
      %v209 = vld [vmem:[%s182 + $0x68] sm:$0xff]
      %v210 = vld [vmem:[%s182 + $0x70] sm:$0xff]
      %v211 = vld [vmem:[%s182 + $0x78] sm:$0xff]
      %v212 = vadd.s32 %v196, 5
      %v213 = vadd.s32 %v197, 5
      %v214 = vadd.s32 %v198, 5
      %v215 = vadd.s32 %v199, 5
      %v216 = vadd.s32 %v200, 5
      %v217 = vadd.s32 %v201, 5
      %v218 = vadd.s32 %v202, 5
      %v219 = vadd.s32 %v203, 5
      %v220 = vadd.s32 %v204, 5
      %v221 = vadd.s32 %v205, 5
      %v222 = vadd.s32 %v206, 5
      %v223 = vadd.s32 %v207, 5
      %v224 = vadd.s32 %v208, 5
      %v225 = vadd.s32 %v209, 5
      %v226 = vadd.s32 %v210, 5
      %v227 = vadd.s32 %v211, 5
      %v228 = vlaneseq
      %v229 = vand.u32 %v228, 127
      %230 = vset.pattern.permute.xlu0 0
      %231 = vperm.xlu0 %230, %v196
      %v232 = vpop.permute.xlu0 %231
      %233 = vset.pattern.permute.xlu0 0
      %234 = vperm.xlu0 %233, %v197
      %v235 = vpop.permute.xlu0 %234
      %236 = vset.pattern.permute.xlu0 0
      %237 = vperm.xlu0 %236, %v198
      %v238 = vpop.permute.xlu0 %237
      %239 = vset.pattern.permute.xlu0 0
      %240 = vperm.xlu0 %239, %v199
      %v241 = vpop.permute.xlu0 %240
      %242 = vset.pattern.permute.xlu0 0
      %243 = vperm.xlu0 %242, %v200
      %v244 = vpop.permute.xlu0 %243
      %245 = vset.pattern.permute.xlu0 0
      %246 = vperm.xlu0 %245, %v201
      %v247 = vpop.permute.xlu0 %246
      %248 = vset.pattern.permute.xlu0 0
      %249 = vperm.xlu0 %248, %v202
      %v250 = vpop.permute.xlu0 %249
      %251 = vset.pattern.permute.xlu0 0
      %252 = vperm.xlu0 %251, %v203
      %v253 = vpop.permute.xlu0 %252
      %254 = vset.pattern.permute.xlu0 0
      %255 = vperm.xlu0 %254, %v204
      %v256 = vpop.permute.xlu0 %255
      %257 = vset.pattern.permute.xlu0 0
      %258 = vperm.xlu0 %257, %v205
      %v259 = vpop.permute.xlu0 %258
      %260 = vset.pattern.permute.xlu0 0
      %261 = vperm.xlu0 %260, %v206
      %v262 = vpop.permute.xlu0 %261
      %263 = vset.pattern.permute.xlu0 0
      %264 = vperm.xlu0 %263, %v207
      %v265 = vpop.permute.xlu0 %264
      %266 = vset.pattern.permute.xlu0 0
      %267 = vperm.xlu0 %266, %v208
      %v268 = vpop.permute.xlu0 %267
      %269 = vset.pattern.permute.xlu0 0
      %270 = vperm.xlu0 %269, %v209
      %v271 = vpop.permute.xlu0 %270
      %272 = vset.pattern.permute.xlu0 0
      %273 = vperm.xlu0 %272, %v210
      %v274 = vpop.permute.xlu0 %273
      %275 = vset.pattern.permute.xlu0 0
      %276 = vperm.xlu0 %275, %v211
      %v277 = vpop.permute.xlu0 %276
      %vm278 = vcmp.eq.s32.totalorder %v229, %v232
      %vm279 = vcmp.eq.s32.totalorder %v229, %v235
      %vm280 = vcmp.eq.s32.totalorder %v229, %v238
      %vm281 = vcmp.eq.s32.totalorder %v229, %v241
      %vm282 = vcmp.eq.s32.totalorder %v229, %v244
      %vm283 = vcmp.eq.s32.totalorder %v229, %v247
      %vm284 = vcmp.eq.s32.totalorder %v229, %v250
      %vm285 = vcmp.eq.s32.totalorder %v229, %v253
      %vm286 = vcmp.eq.s32.totalorder %v229, %v256
      %vm287 = vcmp.eq.s32.totalorder %v229, %v259
      %vm288 = vcmp.eq.s32.totalorder %v229, %v262
      %vm289 = vcmp.eq.s32.totalorder %v229, %v265
      %vm290 = vcmp.eq.s32.totalorder %v229, %v268
      %vm291 = vcmp.eq.s32.totalorder %v229, %v271
      %vm292 = vcmp.eq.s32.totalorder %v229, %v274
      %vm293 = vcmp.eq.s32.totalorder %v229, %v277
      %294 = vset.pattern.permute.xlu0 1
      %295 = vperm.xlu0 %294, %v212
      %v296 = vpop.permute.xlu0 %295
      %297 = vset.pattern.permute.xlu0 1
      %298 = vperm.xlu0 %297, %v213
      %v299 = vpop.permute.xlu0 %298
      %300 = vset.pattern.permute.xlu0 1
      %301 = vperm.xlu0 %300, %v214
      %v302 = vpop.permute.xlu0 %301
      %303 = vset.pattern.permute.xlu0 1
      %304 = vperm.xlu0 %303, %v215
      %v305 = vpop.permute.xlu0 %304
      %306 = vset.pattern.permute.xlu0 1
      %307 = vperm.xlu0 %306, %v216
      %v308 = vpop.permute.xlu0 %307
      %309 = vset.pattern.permute.xlu0 1
      %310 = vperm.xlu0 %309, %v217
      %v311 = vpop.permute.xlu0 %310
      %312 = vset.pattern.permute.xlu0 1
      %313 = vperm.xlu0 %312, %v218
      %v314 = vpop.permute.xlu0 %313
      %315 = vset.pattern.permute.xlu0 1
      %316 = vperm.xlu0 %315, %v219
      %v317 = vpop.permute.xlu0 %316
      %318 = vset.pattern.permute.xlu0 1
      %319 = vperm.xlu0 %318, %v220
      %v320 = vpop.permute.xlu0 %319
      %321 = vset.pattern.permute.xlu0 1
      %322 = vperm.xlu0 %321, %v221
      %v323 = vpop.permute.xlu0 %322
      %324 = vset.pattern.permute.xlu0 1
      %325 = vperm.xlu0 %324, %v222
      %v326 = vpop.permute.xlu0 %325
      %327 = vset.pattern.permute.xlu0 1
      %328 = vperm.xlu0 %327, %v223
      %v329 = vpop.permute.xlu0 %328
      %330 = vset.pattern.permute.xlu0 1
      %331 = vperm.xlu0 %330, %v224
      %v332 = vpop.permute.xlu0 %331
      %333 = vset.pattern.permute.xlu0 1
      %334 = vperm.xlu0 %333, %v225
      %v335 = vpop.permute.xlu0 %334
      %336 = vset.pattern.permute.xlu0 1
      %337 = vperm.xlu0 %336, %v226
      %v338 = vpop.permute.xlu0 %337
      %339 = vset.pattern.permute.xlu0 1
      %340 = vperm.xlu0 %339, %v227
      %v341 = vpop.permute.xlu0 %340
      %vm342 = vcmp.eq.s32.totalorder %v229, %v296
      %vm343 = vcmp.eq.s32.totalorder %v229, %v299
      %vm344 = vcmp.eq.s32.totalorder %v229, %v302
      %vm345 = vcmp.eq.s32.totalorder %v229, %v305
      %vm346 = vcmp.eq.s32.totalorder %v229, %v308
      %vm347 = vcmp.eq.s32.totalorder %v229, %v311
      %vm348 = vcmp.eq.s32.totalorder %v229, %v314
      %vm349 = vcmp.eq.s32.totalorder %v229, %v317
      %vm350 = vcmp.eq.s32.totalorder %v229, %v320
      %vm351 = vcmp.eq.s32.totalorder %v229, %v323
      %vm352 = vcmp.eq.s32.totalorder %v229, %v326
      %vm353 = vcmp.eq.s32.totalorder %v229, %v329
      %vm354 = vcmp.eq.s32.totalorder %v229, %v332
      %vm355 = vcmp.eq.s32.totalorder %v229, %v335
      %vm356 = vcmp.eq.s32.totalorder %v229, %v338
      %vm357 = vcmp.eq.s32.totalorder %v229, %v341
      %vm358 = vmor %vm278, %vm342
      %vm359 = vmor %vm279, %vm343
      %vm360 = vmor %vm280, %vm344
      %vm361 = vmor %vm281, %vm345
      %vm362 = vmor %vm282, %vm346
      %vm363 = vmor %vm283, %vm347
      %vm364 = vmor %vm284, %vm348
      %vm365 = vmor %vm285, %vm349
      %vm366 = vmor %vm286, %vm350
      %vm367 = vmor %vm287, %vm351
      %vm368 = vmor %vm288, %vm352
      %vm369 = vmor %vm289, %vm353
      %vm370 = vmor %vm290, %vm354
      %vm371 = vmor %vm291, %vm355
      %vm372 = vmor %vm292, %vm356
      %vm373 = vmor %vm293, %vm357
      %vm374 = vcmp.eq.s32.totalorder %v229, 12
      %vm375 = vmor %vm358, %vm374
      %vm376 = vmor %vm359, %vm374
      %vm377 = vmor %vm360, %vm374
      %vm378 = vmor %vm361, %vm374
      %vm379 = vmor %vm362, %vm374
      %vm380 = vmor %vm363, %vm374
      %vm381 = vmor %vm364, %vm374
      %vm382 = vmor %vm365, %vm374
      %vm383 = vmor %vm366, %vm374
      %vm384 = vmor %vm367, %vm374
      %vm385 = vmor %vm368, %vm374
      %vm386 = vmor %vm369, %vm374
      %vm387 = vmor %vm370, %vm374
      %vm388 = vmor %vm371, %vm374
      %vm389 = vmor %vm372, %vm374
      %vm390 = vmor %vm373, %vm374
      %v391 = vsel %vm375, 1, 0
      %v392 = vsel %vm376, 1, 0
      %v393 = vsel %vm377, 1, 0
      %v394 = vsel %vm378, 1, 0
      %v395 = vsel %vm379, 1, 0
      %v396 = vsel %vm380, 1, 0
      %v397 = vsel %vm381, 1, 0
      %v398 = vsel %vm382, 1, 0
      %v399 = vsel %vm383, 1, 0
      %v400 = vsel %vm384, 1, 0
      %v401 = vsel %vm385, 1, 0
      %v402 = vsel %vm386, 1, 0
      %v403 = vsel %vm387, 1, 0
      %v404 = vsel %vm388, 1, 0
      %v405 = vsel %vm389, 1, 0
      %v406 = vsel %vm390, 1, 0
      %v407 = vcvt.s32.f32 %v391
      %v408 = vcvt.s32.f32 %v392
      %v409 = vcvt.s32.f32 %v393
      %v410 = vcvt.s32.f32 %v394
      %v411 = vcvt.s32.f32 %v395
      %v412 = vcvt.s32.f32 %v396
      %v413 = vcvt.s32.f32 %v397
      %v414 = vcvt.s32.f32 %v398
      %v415 = vcvt.s32.f32 %v399
      %v416 = vcvt.s32.f32 %v400
      %v417 = vcvt.s32.f32 %v401
      %v418 = vcvt.s32.f32 %v402
      %v419 = vcvt.s32.f32 %v403
      %v420 = vcvt.s32.f32 %v404
      %v421 = vcvt.s32.f32 %v405
      %v422 = vcvt.s32.f32 %v406
      %v423 = vld [vmem:[%s2] sm:$0xff]
      %v424 = vld [vmem:[%s2 + $0x8] sm:$0xff]
      %v425 = vld [vmem:[%s188] sm:$0xff]
      %v426 = vld [vmem:[%s188 + $0x8] sm:$0xff]
      %v427 = vld [vmem:[%s188 + $0x10] sm:$0xff]
      %v428 = vld [vmem:[%s188 + $0x18] sm:$0xff]
      %v429 = vld [vmem:[%s188 + $0x20] sm:$0xff]
      %v430 = vld [vmem:[%s188 + $0x28] sm:$0xff]
      %v431 = vld [vmem:[%s188 + $0x30] sm:$0xff]
      %v432 = vld [vmem:[%s188 + $0x38] sm:$0xff]
      %v433 = vld [vmem:[%s188 + $0x40] sm:$0xff]
      %v434 = vld [vmem:[%s188 + $0x48] sm:$0xff]
      %v435 = vld [vmem:[%s188 + $0x50] sm:$0xff]
      %v436 = vld [vmem:[%s188 + $0x58] sm:$0xff]
      %v437 = vld [vmem:[%s188 + $0x60] sm:$0xff]
      %v438 = vld [vmem:[%s188 + $0x68] sm:$0xff]
      %v439 = vld [vmem:[%s188 + $0x70] sm:$0xff]
      %v440 = vld [vmem:[%s188 + $0x78] sm:$0xff]
      %v441 = vld [vmem:[%s2 + $0x10] sm:$0xf]
      %vm442 = vcmask 31744
      %v444 = vsel %vm442, %v425, 0
      %v447 = vsel %vm442, %v426, 0
      %v450 = vsel %vm442, %v427, 0
      %v453 = vsel %vm442, %v428, 0
      %v456 = vsel %vm442, %v429, 0
      %v459 = vsel %vm442, %v430, 0
      %v462 = vsel %vm442, %v431, 0
      %v465 = vsel %vm442, %v432, 0
      %v468 = vsel %vm442, %v433, 0
      %v471 = vsel %vm442, %v434, 0
      %v474 = vsel %vm442, %v435, 0
      %v477 = vsel %vm442, %v436, 0
      %v480 = vsel %vm442, %v437, 0
      %v483 = vsel %vm442, %v438, 0
      %v486 = vsel %vm442, %v439, 0
      %v489 = vsel %vm442, %v440, 0
      %vm491 = vcmask 1043456
      %v493 = vsel %vm491, %v441, 0
      %495 = vmatprep.subr.mxu0 0.0
      %496 = vmatpush1.msra.mxu0 %v493
      %497 = vmatprep.subr.mxu0 0.0
      %498 = vmatpush1.msra.mxu0 0.0
      %499 = vmatprep.subr.mxu0 0.0
      %500 = vmatpush1.msra.mxu0 0.0
      %501 = vmatprep.subr.mxu0 0.0
      %502 = vmatpush1.msra.mxu0 0.0
      %503 = vmatprep.subr.mxu0 0.0
      %504 = vmatpush1.msra.mxu0 0.0
      %505 = vmatprep.subr.mxu0 0.0
      %506 = vmatpush1.msra.mxu0 0.0
      %507 = vmatprep.subr.mxu0 0.0
      %508 = vmatpush1.msra.mxu0 0.0
      %509 = vmatprep.subr.mxu0 0.0
      %510 = vmatpush1.msra.mxu0 0.0
      %511 = vmatprep.subr.mxu0 0.0
      %512 = vmatpush1.msra.mxu0 0.0
      %513 = vmatprep.subr.mxu0 0.0
      %514 = vmatpush1.msra.mxu0 0.0
      %515 = vmatprep.subr.mxu0 0.0
      %516 = vmatpush1.msra.mxu0 0.0
      %517 = vmatprep.subr.mxu0 0.0
      %518 = vmatpush1.msra.mxu0 0.0
      %519 = vmatprep.subr.mxu0 0.0
      %520 = vmatpush1.msra.mxu0 0.0
      %521 = vmatprep.subr.mxu0 0.0
      %522 = vmatpush1.msra.mxu0 0.0
      %523 = vmatprep.subr.mxu0 0.0
      %524 = vmatpush1.msra.mxu0 0.0
      %525 = vmatprep.subr.mxu0 0.0
      %526 = vmatpush1.msra.mxu0 0.0
      %527 = vmatprep.subr.mxu0 0.0
      %528 = vmatpush1.msra.mxu0 0.0
      %529 = vmatprep.subr.mxu0 0.0
      %530 = vmatpush1.msra.mxu0 0.0
      %531 = vmatprep.subr.mxu0 0.0
      %532 = vmatpush1.msra.mxu0 0.0
      %533 = vmatprep.subr.mxu0 0.0
      %534 = vmatpush1.msra.mxu0 0.0
      %535 = vmatprep.subr.mxu0 0.0
      %536 = vmatpush1.msra.mxu0 0.0
      %537 = vmatprep.subr.mxu0 0.0
      %538 = vmatpush1.msra.mxu0 0.0
      %539 = vmatprep.subr.mxu0 0.0
      %540 = vmatpush1.msra.mxu0 0.0
      %541 = vmatprep.subr.mxu0 0.0
      %542 = vmatpush1.msra.mxu0 0.0
      %543 = vmatprep.subr.mxu0 0.0
      %544 = vmatpush1.msra.mxu0 0.0
      %545 = vmatprep.subr.mxu0 0.0
      %546 = vmatpush1.msra.mxu0 0.0
      %547 = vmatprep.subr.mxu0 0.0
      %548 = vmatpush1.msra.mxu0 0.0
      %549 = vmatprep.subr.mxu0 0.0
      %550 = vmatpush1.msra.mxu0 0.0
      %551 = vmatprep.subr.mxu0 0.0
      %552 = vmatpush1.msra.mxu0 0.0
      %553 = vmatprep.subr.mxu0 0.0
      %554 = vmatpush1.msra.mxu0 0.0
      %555 = vmatprep.subr.mxu0 0.0
      %556 = vmatpush1.msra.mxu0 0.0
      %557 = vmatprep.subr.mxu0 0.0
      %558 = vmatpush1.msra.mxu0 0.0
      %559 = vmatprep.mubr.f32.mxu0 0.0
      %560 = vmatmul.mubr.f32.gmra.mrb[0].mxu0 %v444
      %v561 = vpop.f32.mrb[0].mxu0
      %v562 = vadd.f32 0.0, %v561
      %v563 = vpop.f32.mrb[0].mxu0
      %564 = vmatprep.mubr.f32.mxu0 0.0
      %565 = vmatmul.mubr.f32.gmra.mrb[0].mxu0 %v447
      %v566 = vpop.f32.mrb[0].mxu0
      %v567 = vadd.f32 0.0, %v566
      %v568 = vpop.f32.mrb[0].mxu0
      %569 = vmatprep.mubr.f32.mxu0 0.0
      %570 = vmatmul.mubr.f32.gmra.mrb[0].mxu0 %v450
      %v571 = vpop.f32.mrb[0].mxu0
      %v572 = vadd.f32 0.0, %v571
      %v573 = vpop.f32.mrb[0].mxu0
      %574 = vmatprep.mubr.f32.mxu0 0.0
      %575 = vmatmul.mubr.f32.gmra.mrb[0].mxu0 %v453
      %v576 = vpop.f32.mrb[0].mxu0
      %v577 = vadd.f32 0.0, %v576
      %v578 = vpop.f32.mrb[0].mxu0
      %579 = vmatprep.mubr.f32.mxu0 0.0
      %580 = vmatmul.mubr.f32.gmra.mrb[0].mxu0 %v456
      %v581 = vpop.f32.mrb[0].mxu0
      %v582 = vadd.f32 0.0, %v581
      %v583 = vpop.f32.mrb[0].mxu0
      %584 = vmatprep.mubr.f32.mxu0 0.0
      %585 = vmatmul.mubr.f32.gmra.mrb[0].mxu0 %v459
      %v586 = vpop.f32.mrb[0].mxu0
      %v587 = vadd.f32 0.0, %v586
      %v588 = vpop.f32.mrb[0].mxu0
      %589 = vmatprep.mubr.f32.mxu0 0.0
      %590 = vmatmul.mubr.f32.gmra.mrb[0].mxu0 %v462
      %v591 = vpop.f32.mrb[0].mxu0
      %v592 = vadd.f32 0.0, %v591
      %v593 = vpop.f32.mrb[0].mxu0
      %594 = vmatprep.mubr.f32.mxu0 0.0
      %595 = vmatmul.mubr.f32.gmra.mrb[0].mxu0 %v465
      %v596 = vpop.f32.mrb[0].mxu0
      %v597 = vadd.f32 0.0, %v596
      %v598 = vpop.f32.mrb[0].mxu0
      %599 = vmatprep.mubr.f32.mxu0 0.0
      %600 = vmatmul.mubr.f32.gmra.mrb[0].mxu0 %v468
      %v601 = vpop.f32.mrb[0].mxu0
      %v602 = vadd.f32 0.0, %v601
      %v603 = vpop.f32.mrb[0].mxu0
      %604 = vmatprep.mubr.f32.mxu0 0.0
      %605 = vmatmul.mubr.f32.gmra.mrb[0].mxu0 %v471
      %v606 = vpop.f32.mrb[0].mxu0
      %v607 = vadd.f32 0.0, %v606
      %v608 = vpop.f32.mrb[0].mxu0
      %609 = vmatprep.mubr.f32.mxu0 0.0
      %610 = vmatmul.mubr.f32.gmra.mrb[0].mxu0 %v474
      %v611 = vpop.f32.mrb[0].mxu0
      %v612 = vadd.f32 0.0, %v611
      %v613 = vpop.f32.mrb[0].mxu0
      %614 = vmatprep.mubr.f32.mxu0 0.0
      %615 = vmatmul.mubr.f32.gmra.mrb[0].mxu0 %v477
      %v616 = vpop.f32.mrb[0].mxu0
      %v617 = vadd.f32 0.0, %v616
      %v618 = vpop.f32.mrb[0].mxu0
      %619 = vmatprep.mubr.f32.mxu0 0.0
      %620 = vmatmul.mubr.f32.gmra.mrb[0].mxu0 %v480
      %v621 = vpop.f32.mrb[0].mxu0
      %v622 = vadd.f32 0.0, %v621
      %v623 = vpop.f32.mrb[0].mxu0
      %624 = vmatprep.mubr.f32.mxu0 0.0
      %625 = vmatmul.mubr.f32.gmra.mrb[0].mxu0 %v483
      %v626 = vpop.f32.mrb[0].mxu0
      %v627 = vadd.f32 0.0, %v626
      %v628 = vpop.f32.mrb[0].mxu0
      %629 = vmatprep.mubr.f32.mxu0 0.0
      %630 = vmatmul.mubr.f32.gmra.mrb[0].mxu0 %v486
      %v631 = vpop.f32.mrb[0].mxu0
      %v632 = vadd.f32 0.0, %v631
      %v633 = vpop.f32.mrb[0].mxu0
      %634 = vmatprep.mubr.f32.mxu0 0.0
      %635 = vmatmul.mubr.f32.gmra.mrb[0].mxu0 %v489
      %v636 = vpop.f32.mrb[0].mxu0
      %v637 = vadd.f32 0.0, %v636
      %v638 = vpop.f32.mrb[0].mxu0
      %639 = vdwg.mxu0
      %vm640 = vcmask 130048
      %v642 = vsel %vm640, %v407, 0
      %v645 = vsel %vm640, %v408, 0
      %v648 = vsel %vm640, %v409, 0
      %v651 = vsel %vm640, %v410, 0
      %v654 = vsel %vm640, %v411, 0
      %v657 = vsel %vm640, %v412, 0
      %v660 = vsel %vm640, %v413, 0
      %v663 = vsel %vm640, %v414, 0
      %v666 = vsel %vm640, %v415, 0
      %v669 = vsel %vm640, %v416, 0
      %v672 = vsel %vm640, %v417, 0
      %v675 = vsel %vm640, %v418, 0
      %v678 = vsel %vm640, %v419, 0
      %v681 = vsel %vm640, %v420, 0
      %v684 = vsel %vm640, %v421, 0
      %v687 = vsel %vm640, %v422, 0
      %689 = vmatprep.subr.mxu0 0.0
      %690 = vmatpush1.msra.mxu0 %v423
      %691 = vmatprep.subr.mxu0 0.0
      %692 = vmatpush1.msra.mxu0 %v424
      %693 = vmatprep.subr.mxu0 0.0
      %694 = vmatpush1.msra.mxu0 0.0
      %695 = vmatprep.subr.mxu0 0.0
      %696 = vmatpush1.msra.mxu0 0.0
      %697 = vmatprep.subr.mxu0 0.0
      %698 = vmatpush1.msra.mxu0 0.0
      %699 = vmatprep.subr.mxu0 0.0
      %700 = vmatpush1.msra.mxu0 0.0
      %701 = vmatprep.subr.mxu0 0.0
      %702 = vmatpush1.msra.mxu0 0.0
      %703 = vmatprep.subr.mxu0 0.0
      %704 = vmatpush1.msra.mxu0 0.0
      %705 = vmatprep.subr.mxu0 0.0
      %706 = vmatpush1.msra.mxu0 0.0
      %707 = vmatprep.subr.mxu0 0.0
      %708 = vmatpush1.msra.mxu0 0.0
      %709 = vmatprep.subr.mxu0 0.0
      %710 = vmatpush1.msra.mxu0 0.0
      %711 = vmatprep.subr.mxu0 0.0
      %712 = vmatpush1.msra.mxu0 0.0
      %713 = vmatprep.subr.mxu0 0.0
      %714 = vmatpush1.msra.mxu0 0.0
      %715 = vmatprep.subr.mxu0 0.0
      %716 = vmatpush1.msra.mxu0 0.0
      %717 = vmatprep.subr.mxu0 0.0
      %718 = vmatpush1.msra.mxu0 0.0
      %719 = vmatprep.subr.mxu0 0.0
      %720 = vmatpush1.msra.mxu0 0.0
      %721 = vmatprep.subr.mxu0 0.0
      %722 = vmatpush1.msra.mxu0 0.0
      %723 = vmatprep.subr.mxu0 0.0
      %724 = vmatpush1.msra.mxu0 0.0
      %725 = vmatprep.subr.mxu0 0.0
      %726 = vmatpush1.msra.mxu0 0.0
      %727 = vmatprep.subr.mxu0 0.0
      %728 = vmatpush1.msra.mxu0 0.0
      %729 = vmatprep.subr.mxu0 0.0
      %730 = vmatpush1.msra.mxu0 0.0
      %731 = vmatprep.subr.mxu0 0.0
      %732 = vmatpush1.msra.mxu0 0.0
      %733 = vmatprep.subr.mxu0 0.0
      %734 = vmatpush1.msra.mxu0 0.0
      %735 = vmatprep.subr.mxu0 0.0
      %736 = vmatpush1.msra.mxu0 0.0
      %737 = vmatprep.subr.mxu0 0.0
      %738 = vmatpush1.msra.mxu0 0.0
      %739 = vmatprep.subr.mxu0 0.0
      %740 = vmatpush1.msra.mxu0 0.0
      %741 = vmatprep.subr.mxu0 0.0
      %742 = vmatpush1.msra.mxu0 0.0
      %743 = vmatprep.subr.mxu0 0.0
      %744 = vmatpush1.msra.mxu0 0.0
      %745 = vmatprep.subr.mxu0 0.0
      %746 = vmatpush1.msra.mxu0 0.0
      %747 = vmatprep.subr.mxu0 0.0
      %748 = vmatpush1.msra.mxu0 0.0
      %749 = vmatprep.subr.mxu0 0.0
      %750 = vmatpush1.msra.mxu0 0.0
      %751 = vmatprep.subr.mxu0 0.0
      %752 = vmatpush1.msra.mxu0 0.0
      %753 = vmatprep.mubr.f32.mxu0 0.0
      %754 = vmatmul.mubr.f32.gmra.mrb[0].mxu0 %v642
      %v755 = vpop.f32.mrb[0].mxu0
      %v756 = vadd.f32 %v562, %v755
      %v757 = vpop.f32.mrb[0].mxu0
      %758 = vmatprep.mubr.f32.mxu0 0.0
      %759 = vmatmul.mubr.f32.gmra.mrb[0].mxu0 %v645
      %v760 = vpop.f32.mrb[0].mxu0
      %v761 = vadd.f32 %v567, %v760
      %v762 = vpop.f32.mrb[0].mxu0
      %763 = vmatprep.mubr.f32.mxu0 0.0
      %764 = vmatmul.mubr.f32.gmra.mrb[0].mxu0 %v648
      %v765 = vpop.f32.mrb[0].mxu0
      %v766 = vadd.f32 %v572, %v765
      %v767 = vpop.f32.mrb[0].mxu0
      %768 = vmatprep.mubr.f32.mxu0 0.0
      %769 = vmatmul.mubr.f32.gmra.mrb[0].mxu0 %v651
      %v770 = vpop.f32.mrb[0].mxu0
      %v771 = vadd.f32 %v577, %v770
      %v772 = vpop.f32.mrb[0].mxu0
      %773 = vmatprep.mubr.f32.mxu0 0.0
      %774 = vmatmul.mubr.f32.gmra.mrb[0].mxu0 %v654
      %v775 = vpop.f32.mrb[0].mxu0
      %v776 = vadd.f32 %v582, %v775
      %v777 = vpop.f32.mrb[0].mxu0
      %778 = vmatprep.mubr.f32.mxu0 0.0
      %779 = vmatmul.mubr.f32.gmra.mrb[0].mxu0 %v657
      %v780 = vpop.f32.mrb[0].mxu0
      %v781 = vadd.f32 %v587, %v780
      %v782 = vpop.f32.mrb[0].mxu0
      %783 = vmatprep.mubr.f32.mxu0 0.0
      %784 = vmatmul.mubr.f32.gmra.mrb[0].mxu0 %v660
      %v785 = vpop.f32.mrb[0].mxu0
      %v786 = vadd.f32 %v592, %v785
      %v787 = vpop.f32.mrb[0].mxu0
      %788 = vmatprep.mubr.f32.mxu0 0.0
      %789 = vmatmul.mubr.f32.gmra.mrb[0].mxu0 %v663
      %v790 = vpop.f32.mrb[0].mxu0
      %v791 = vadd.f32 %v597, %v790
      %v792 = vpop.f32.mrb[0].mxu0
      %793 = vmatprep.mubr.f32.mxu0 0.0
      %794 = vmatmul.mubr.f32.gmra.mrb[0].mxu0 %v666
      %v795 = vpop.f32.mrb[0].mxu0
      %v796 = vadd.f32 %v602, %v795
      %v797 = vpop.f32.mrb[0].mxu0
      %798 = vmatprep.mubr.f32.mxu0 0.0
      %799 = vmatmul.mubr.f32.gmra.mrb[0].mxu0 %v669
      %v800 = vpop.f32.mrb[0].mxu0
      %v801 = vadd.f32 %v607, %v800
      %v802 = vpop.f32.mrb[0].mxu0
      %803 = vmatprep.mubr.f32.mxu0 0.0
      %804 = vmatmul.mubr.f32.gmra.mrb[0].mxu0 %v672
      %v805 = vpop.f32.mrb[0].mxu0
      %v806 = vadd.f32 %v612, %v805
      %v807 = vpop.f32.mrb[0].mxu0
      %808 = vmatprep.mubr.f32.mxu0 0.0
      %809 = vmatmul.mubr.f32.gmra.mrb[0].mxu0 %v675
      %v810 = vpop.f32.mrb[0].mxu0
      %v811 = vadd.f32 %v617, %v810
      %v812 = vpop.f32.mrb[0].mxu0
      %813 = vmatprep.mubr.f32.mxu0 0.0
      %814 = vmatmul.mubr.f32.gmra.mrb[0].mxu0 %v678
      %v815 = vpop.f32.mrb[0].mxu0
      %v816 = vadd.f32 %v622, %v815
      %v817 = vpop.f32.mrb[0].mxu0
      %818 = vmatprep.mubr.f32.mxu0 0.0
      %819 = vmatmul.mubr.f32.gmra.mrb[0].mxu0 %v681
      %v820 = vpop.f32.mrb[0].mxu0
      %v821 = vadd.f32 %v627, %v820
      %v822 = vpop.f32.mrb[0].mxu0
      %823 = vmatprep.mubr.f32.mxu0 0.0
      %824 = vmatmul.mubr.f32.gmra.mrb[0].mxu0 %v684
      %v825 = vpop.f32.mrb[0].mxu0
      %v826 = vadd.f32 %v632, %v825
      %v827 = vpop.f32.mrb[0].mxu0
      %828 = vmatprep.mubr.f32.mxu0 0.0
      %829 = vmatmul.mubr.f32.gmra.mrb[0].mxu0 %v687
      %v830 = vpop.f32.mrb[0].mxu0
      %v831 = vadd.f32 %v637, %v830
      %v832 = vpop.f32.mrb[0].mxu0
      %833 = vdwg.mxu0
      %vm834 = vcmask 261120
      %835 = vst.msk [vmem:[%s194] sm:$0xff] %vm834, %v756
      %836 = vst.msk [vmem:[%s194 + $0x8] sm:$0xff] %vm834, %v761
      %837 = vst.msk [vmem:[%s194 + $0x10] sm:$0xff] %vm834, %v766
      %838 = vst.msk [vmem:[%s194 + $0x18] sm:$0xff] %vm834, %v771
      %839 = vst.msk [vmem:[%s194 + $0x20] sm:$0xff] %vm834, %v776
      %840 = vst.msk [vmem:[%s194 + $0x28] sm:$0xff] %vm834, %v781
      %841 = vst.msk [vmem:[%s194 + $0x30] sm:$0xff] %vm834, %v786
      %842 = vst.msk [vmem:[%s194 + $0x38] sm:$0xff] %vm834, %v791
      %843 = vst.msk [vmem:[%s194 + $0x40] sm:$0xff] %vm834, %v796
      %844 = vst.msk [vmem:[%s194 + $0x48] sm:$0xff] %vm834, %v801
      %845 = vst.msk [vmem:[%s194 + $0x50] sm:$0xff] %vm834, %v806
      %846 = vst.msk [vmem:[%s194 + $0x58] sm:$0xff] %vm834, %v811
      %847 = vst.msk [vmem:[%s194 + $0x60] sm:$0xff] %vm834, %v816
      %848 = vst.msk [vmem:[%s194 + $0x68] sm:$0xff] %vm834, %v821
      %849 = vst.msk [vmem:[%s194 + $0x70] sm:$0xff] %vm834, %v826
      %850 = vst.msk [vmem:[%s194 + $0x78] sm:$0xff] %vm834, %v831
      %s851 = smul.u32 16, %s14
      %p852 = scmp.lt.s32.totalorder %s851, 31
      %s853 = scalar_select %p852, %s851, 31
      %s854 = smul.addr %s853, 8
      %s855 = scalar_lea.vmem %s3, %s854
      // Predicated region
      $region33: #{tpu_custom_call.1} parent=31 // pred_check
        %p856 = pneg %p105
      $region34: #{tpu_custom_call.1} parent=31 // pred_check_branch
        %858 = sbr.rel (%p856) target = $region36
      $region35: #{tpu_custom_call.1} parent=31 // pred_region
        %s859 = smul.u32 16, %s14
      $region36: #{tpu_custom_call.1} parent=31 // pred_fallthru
        _
    $region32: #{tpu_custom_call.1} parent=5 // pred_fallthru
      _
    %p860 = scmp.le.s32.totalorder 2, %s9
    // Predicated region
    $region37: #{tpu_custom_call.1} parent=5 // pred_check
      %p861 = pneg %p860
    $region38: #{tpu_custom_call.1} parent=5 // pred_check_branch
      %863 = sbr.rel (%p861) target = $region40
    $region39: #{tpu_custom_call.1} parent=5 // pred_region
      %s864 = ssub.s32 %s9, 2
      // Predicated region
      $region41: #{tpu_custom_call.1} parent=39 // pred_check
        %p865 = pneg %p111
      $region42: #{tpu_custom_call.1} parent=39 // pred_check_branch
        %867 = sbr.rel (%p865) target = $region44
      $region43: #{tpu_custom_call.1} parent=39 // pred_region
        %s868 = smul.u32 16, %s15
        %p869 = scmp.lt.s32.totalorder %s868, 31
        %s870 = scalar_select %p869, %s868, 31
        %s871 = smul.addr %s870, 8
        %s872 = scalar_lea.vmem %s3, %s871
      $region44: #{tpu_custom_call.1} parent=39 // pred_fallthru
        _
    $region40: #{tpu_custom_call.1} parent=5 // pred_fallthru
      _
  $region6: #{tpu_custom_call.1} parent=0 // loop_footer
    %s13 = sadd.s32 1, %s9
  $region7: #{tpu_custom_call.1} parent=0 // loop_footer_branch
    %8 = sbr.rel target = $region3
  $region8: #{tpu_custom_call.1} parent=0 // loop_exit
    _

</llo_original>
